<compile_context>
chip_gen: v7x
topology: tpu7x:2x2x1
jax: 0.10.0
libtpu: 0.0.40
codegen_flags: <defaults>
</compile_context>

<pallas_src>
import jax
import jax.numpy as jnp
import numpy as np
from jax import lax
from jax.experimental import pallas as pl
from jax.experimental.pallas import tpu as pltpu

K = 7             # conv kernel size
P = (K - 1) // 2  # padding


# ------------------------------------------------------------------ kernel 1: fused ZPool (all 3 branches)

def _zpool_kernel(x_ref, maxc_ref, meanc_ref, maxh_ref, meanh_ref, maxw_ref, meanw_ref):
    x = x_ref[...]                                      # (Bt, C, H, W)
    maxc_ref[...] = jnp.max(x, axis=1, keepdims=True)   # (Bt, 1, H, W)  pool over C (hw branch)
    meanc_ref[...] = jnp.mean(x, axis=1, keepdims=True)
    maxh_ref[...] = jnp.max(x, axis=2, keepdims=True)   # (Bt, C, 1, W)  pool over H (cw branch)
    meanh_ref[...] = jnp.mean(x, axis=2, keepdims=True)
    maxw_ref[...] = jnp.max(x, axis=3, keepdims=True)   # (Bt, C, H, 1)  pool over W (hc branch)
    meanw_ref[...] = jnp.mean(x, axis=3, keepdims=True)


def fused_zpool(x, batch_tile):
    B, C, H, W = x.shape
    Bt = batch_tile
    bmap = lambda b: (b, 0, 0, 0)
    out_shapes = (
        jax.ShapeDtypeStruct((B, 1, H, W), x.dtype),
        jax.ShapeDtypeStruct((B, 1, H, W), x.dtype),
        jax.ShapeDtypeStruct((B, C, 1, W), x.dtype),
        jax.ShapeDtypeStruct((B, C, 1, W), x.dtype),
        jax.ShapeDtypeStruct((B, C, H, 1), x.dtype),
        jax.ShapeDtypeStruct((B, C, H, 1), x.dtype),
    )
    out_specs = (
        pl.BlockSpec((Bt, 1, H, W), bmap),
        pl.BlockSpec((Bt, 1, H, W), bmap),
        pl.BlockSpec((Bt, C, 1, W), bmap),
        pl.BlockSpec((Bt, C, 1, W), bmap),
        pl.BlockSpec((Bt, C, H, 1), bmap),
        pl.BlockSpec((Bt, C, H, 1), bmap),
    )
    return pl.pallas_call(
        _zpool_kernel,
        out_shape=out_shapes,
        grid=(pl.cdiv(B, Bt),),
        in_specs=[pl.BlockSpec((Bt, C, H, W), bmap)],
        out_specs=out_specs,
        compiler_params=pltpu.CompilerParams(dimension_semantics=("parallel",)),
    )(x)


# ------------------------------------------------------------------ kernel 2: fused gate apply + average

def _apply_gates_kernel(x_ref, gcw_ref, ghc_ref, ghw_ref, o_ref):
    x = x_ref[...]                                           # (Bt, C, H, W)
    # broadcasts from size-1 dims only: (Bt,C,1,W) + (Bt,C,H,1) + (Bt,1,H,W) -> (Bt,C,H,W)
    gate = gcw_ref[...] + ghc_ref[...] + ghw_ref[...]
    o_ref[...] = x * (gate * (1.0 / 3.0))


def fused_apply_gates(x, g_cw, g_hc, g_hw, batch_tile):
    B, C, H, W = x.shape
    Bt = batch_tile
    bmap = lambda b: (b, 0, 0, 0)
    return pl.pallas_call(
        _apply_gates_kernel,
        out_shape=jax.ShapeDtypeStruct((B, C, H, W), x.dtype),
        grid=(pl.cdiv(B, Bt),),
        in_specs=[
            pl.BlockSpec((Bt, C, H, W), bmap),
            pl.BlockSpec((Bt, C, 1, W), bmap),
            pl.BlockSpec((Bt, C, H, 1), bmap),
            pl.BlockSpec((Bt, 1, H, W), bmap),
        ],
        out_specs=pl.BlockSpec((Bt, C, H, W), bmap),
        compiler_params=pltpu.CompilerParams(dimension_semantics=("parallel",)),
    )(x, g_cw, g_hc, g_hw)


# ------------------------------------------------------------------ tiny XLA-side conv on pooled planes

def _conv_bn_sigmoid(zmax, zmean, w, b):
    """zmax/zmean: (B,1,R,S) pooled planes; w: (1,2,K,K) BN-folded; b: (1,). -> (B,1,R,S)."""
    z = jnp.concatenate([zmax, zmean], axis=1)
    y = lax.conv_general_dilated(z, w, window_strides=(1, 1), padding=[(P, P), (P, P)],
                                 dimension_numbers=("NCHW", "OIHW", "NCHW"))
    return jax.nn.sigmoid(y + b.reshape(1, 1, 1, 1))


# ------------------------------------------------------------------ params

def fold_bn(w, gamma, beta, running_mean, running_var, eps=1e-5):
    """Fold BatchNorm2d(1) (eval mode) into the (1,2,K,K) conv weight (conv has no bias)."""
    s = gamma / jnp.sqrt(running_var + eps)        # (1,)
    w_eff = w * s.reshape(1, 1, 1, 1)              # (1,2,K,K)
    b_eff = (beta - running_mean * s).reshape(1)   # (1,)
    return w_eff.astype(jnp.float32), b_eff.astype(jnp.float32)


def init_params(key):
    """Deterministic init: Conv2d(2,1,7,bias=False) uniform init + default BN stats, BN-folded."""
    params = {}
    bound = 1.0 / np.sqrt(2 * K * K)
    for name, k in zip(("cw", "hc", "hw"), jax.random.split(key, 3)):
        w = jax.random.uniform(k, (1, 2, K, K), jnp.float32, -bound, bound)
        gamma = jnp.ones((1,), jnp.float32)
        beta = jnp.zeros((1,), jnp.float32)
        rmean = jnp.zeros((1,), jnp.float32)
        rvar = jnp.ones((1,), jnp.float32)
        w_eff, b_eff = fold_bn(w, gamma, beta, rmean, rvar)
        params[f"{name}_w"] = w_eff
        params[f"{name}_b"] = b_eff
    return params


# ------------------------------------------------------------------ forward

def _pick_batch_tile(B, C, H, W, budget_bytes=1 << 20):
    """Several batch elements per grid step, capped so the x block stays ~<=1 MiB."""
    per_batch = C * H * W * 4
    return max(1, min(B, budget_bytes // max(per_batch, 1)))


@jax.jit
def triplet_attention(x, params):
    # x: NCHW float32 (same layout as the PyTorch module)
    B, C, H, W = x.shape
    Bt = _pick_batch_tile(B, C, H, W)

    maxc, meanc, maxh, meanh, maxw, meanw = fused_zpool(x, Bt)

    # hw branch (identity permutation): conv plane (H, W)
    g_hw = _conv_bn_sigmoid(maxc, meanc, params["hw_w"], params["hw_b"])          # (B,1,H,W)

    # cw branch (permute (0,2,1,3) -> pool over H): conv plane (C, W)
    g_cw = _conv_bn_sigmoid(jnp.swapaxes(maxh, 1, 2), jnp.swapaxes(meanh, 1, 2),
                            params["cw_w"], params["cw_b"])                        # (B,1,C,W)
    g_cw = jnp.swapaxes(g_cw, 1, 2)                                                # (B,C,1,W)

    # hc branch (permute (0,3,2,1) -> pool over W): conv plane (H, C)
    g_hc = _conv_bn_sigmoid(jnp.transpose(maxw, (0, 3, 2, 1)),
                            jnp.transpose(meanw, (0, 3, 2, 1)),
                            params["hc_w"], params["hc_b"])                        # (B,1,H,C)
    g_hc = jnp.transpose(g_hc, (0, 3, 2, 1))                                       # (B,C,H,1)

    return fused_apply_gates(x, g_cw, g_hc, g_hw, Bt)


# ------------------------------------------------------------------ pure-JAX reference (mirrors PyTorch)

def _gate_ref(x, w, b):
    zmax = jnp.max(x, axis=1, keepdims=True)
    zmean = jnp.mean(x, axis=1, keepdims=True)
    z = jnp.concatenate([zmax, zmean], axis=1)
    y = lax.conv_general_dilated(z, w, (1, 1), [(P, P), (P, P)],
                                 dimension_numbers=("NCHW", "OIHW", "NCHW")) + b.reshape(1, 1, 1, 1)
    return x * jax.nn.sigmoid(y)


def triplet_ref(x, params):
    o11 = jnp.transpose(_gate_ref(jnp.transpose(x, (0, 2, 1, 3)), params["cw_w"], params["cw_b"]),
                        (0, 2, 1, 3))
    o21 = jnp.transpose(_gate_ref(jnp.transpose(x, (0, 3, 2, 1)), params["hc_w"], params["hc_b"]),
                        (0, 3, 2, 1))
    o3 = _gate_ref(x, params["hw_w"], params["hw_b"])
    return (o3 + o11 + o21) / 3.0


# ------------------------------------------------------------------ main

if __name__ == "__main__":
    key = jax.random.PRNGKey(0)
    kx, kp = jax.random.split(key)
    B, C, H, W = 2, 4, 16, 16
    x = jax.random.normal(kx, (B, C, H, W), dtype=jnp.float32)
    params = init_params(kp)

    out = jax.block_until_ready(triplet_attention(x, params))

    ref = triplet_ref(x, params)
    np.testing.assert_allclose(np.asarray(out), np.asarray(ref), rtol=1e-4, atol=1e-5)

    print("KERNEL_OK")
</pallas_src>

<mosaic_0001>
module attributes {stable_mosaic.version = 11 : i64} {
  func.func @_zpool_kernel(%arg0: i32, %arg1: memref<2x4x16x16xf32, #tpu.memory_space<vmem>>, %arg2: memref<2x1x16x16xf32, #tpu.memory_space<vmem>>, %arg3: memref<2x1x16x16xf32, #tpu.memory_space<vmem>>, %arg4: memref<2x4x1x16xf32, #tpu.memory_space<vmem>>, %arg5: memref<2x4x1x16xf32, #tpu.memory_space<vmem>>, %arg6: memref<2x4x16x1xf32, #tpu.memory_space<vmem>>, %arg7: memref<2x4x16x1xf32, #tpu.memory_space<vmem>>) attributes {dimension_semantics = [#tpu.dimension_semantics<parallel>], iteration_bounds = array<i64: 1>, scalar_prefetch = 0 : i64, scratch_operands = 0 : i64, tpu.core_type = #tpu.core_type<tc>, window_params = [{transform_indices = @transform_0, window_bounds = array<i64: 2, 4, 16, 16>}, {transform_indices = @transform_1, window_bounds = array<i64: 2, 1, 16, 16>}, {transform_indices = @transform_2, window_bounds = array<i64: 2, 1, 16, 16>}, {transform_indices = @transform_3, window_bounds = array<i64: 2, 4, 1, 16>}, {transform_indices = @transform_4, window_bounds = array<i64: 2, 4, 1, 16>}, {transform_indices = @transform_5, window_bounds = array<i64: 2, 4, 16, 1>}, {transform_indices = @transform_6, window_bounds = array<i64: 2, 4, 16, 1>}]} {
    %c0 = arith.constant 0 : index
    %c0_0 = arith.constant 0 : index
    %c0_1 = arith.constant 0 : index
    %c0_2 = arith.constant 0 : index
    %0 = vector.load %arg1[%c0, %c0_0, %c0_1, %c0_2] : memref<2x4x16x16xf32, #tpu.memory_space<vmem>>, vector<2x4x16x16xf32>
    %cst = arith.constant dense<0xFF800000> : vector<2x16x16xf32>
    %1 = vector.multi_reduction <maximumf>, %0, %cst [1] : vector<2x4x16x16xf32> to vector<2x16x16xf32>
    %2 = vector.shape_cast %1 : vector<2x16x16xf32> to vector<2x1x16x16xf32>
    %c0_3 = arith.constant 0 : index
    %c0_4 = arith.constant 0 : index
    %c0_5 = arith.constant 0 : index
    %c0_6 = arith.constant 0 : index
    %3 = vector.load %arg2[%c0_3, %c0_4, %c0_5, %c0_6] : memref<2x1x16x16xf32, #tpu.memory_space<vmem>>, vector<2x1x16x16xf32>
    tpu.vector_store %arg2[%c0_3, %c0_4, %c0_5, %c0_6], %2 {strides = array<i32>} : memref<2x1x16x16xf32, #tpu.memory_space<vmem>>, vector<2x1x16x16xf32>,
    %cst_7 = arith.constant dense<0.000000e+00> : vector<2x16x16xf32>
    %4 = vector.multi_reduction <add>, %0, %cst_7 [1] : vector<2x4x16x16xf32> to vector<2x16x16xf32>
    %5 = vector.shape_cast %4 : vector<2x16x16xf32> to vector<2x1x16x16xf32>
    %cst_8 = arith.constant 4.000000e+00 : f32
    %6 = vector.broadcast %cst_8 : f32 to vector<2x1x16x16xf32>
    %7 = arith.divf %5, %6 : vector<2x1x16x16xf32>
    %c0_9 = arith.constant 0 : index
    %c0_10 = arith.constant 0 : index
    %c0_11 = arith.constant 0 : index
    %c0_12 = arith.constant 0 : index
    %8 = vector.load %arg3[%c0_9, %c0_10, %c0_11, %c0_12] : memref<2x1x16x16xf32, #tpu.memory_space<vmem>>, vector<2x1x16x16xf32>
    tpu.vector_store %arg3[%c0_9, %c0_10, %c0_11, %c0_12], %7 {strides = array<i32>} : memref<2x1x16x16xf32, #tpu.memory_space<vmem>>, vector<2x1x16x16xf32>,
    %cst_13 = arith.constant dense<0xFF800000> : vector<2x4x16xf32>
    %9 = vector.multi_reduction <maximumf>, %0, %cst_13 [2] : vector<2x4x16x16xf32> to vector<2x4x16xf32>
    %10 = vector.shape_cast %9 : vector<2x4x16xf32> to vector<2x4x1x16xf32>
    %c0_14 = arith.constant 0 : index
    %c0_15 = arith.constant 0 : index
    %c0_16 = arith.constant 0 : index
    %c0_17 = arith.constant 0 : index
    %11 = vector.load %arg4[%c0_14, %c0_15, %c0_16, %c0_17] : memref<2x4x1x16xf32, #tpu.memory_space<vmem>>, vector<2x4x1x16xf32>
    tpu.vector_store %arg4[%c0_14, %c0_15, %c0_16, %c0_17], %10 {strides = array<i32>} : memref<2x4x1x16xf32, #tpu.memory_space<vmem>>, vector<2x4x1x16xf32>,
    %cst_18 = arith.constant dense<0.000000e+00> : vector<2x4x16xf32>
    %12 = vector.multi_reduction <add>, %0, %cst_18 [2] : vector<2x4x16x16xf32> to vector<2x4x16xf32>
    %13 = vector.shape_cast %12 : vector<2x4x16xf32> to vector<2x4x1x16xf32>
    %cst_19 = arith.constant 1.600000e+01 : f32
    %14 = vector.broadcast %cst_19 : f32 to vector<2x4x1x16xf32>
    %15 = arith.divf %13, %14 : vector<2x4x1x16xf32>
    %c0_20 = arith.constant 0 : index
    %c0_21 = arith.constant 0 : index
    %c0_22 = arith.constant 0 : index
    %c0_23 = arith.constant 0 : index
    %16 = vector.load %arg5[%c0_20, %c0_21, %c0_22, %c0_23] : memref<2x4x1x16xf32, #tpu.memory_space<vmem>>, vector<2x4x1x16xf32>
    tpu.vector_store %arg5[%c0_20, %c0_21, %c0_22, %c0_23], %15 {strides = array<i32>} : memref<2x4x1x16xf32, #tpu.memory_space<vmem>>, vector<2x4x1x16xf32>,
    %cst_24 = arith.constant dense<0xFF800000> : vector<2x4x16xf32>
    %17 = vector.multi_reduction <maximumf>, %0, %cst_24 [3] : vector<2x4x16x16xf32> to vector<2x4x16xf32>
    %18 = vector.shape_cast %17 : vector<2x4x16xf32> to vector<2x4x16x1xf32>
    %c0_25 = arith.constant 0 : index
    %c0_26 = arith.constant 0 : index
    %c0_27 = arith.constant 0 : index
    %c0_28 = arith.constant 0 : index
    %19 = vector.load %arg6[%c0_25, %c0_26, %c0_27, %c0_28] : memref<2x4x16x1xf32, #tpu.memory_space<vmem>>, vector<2x4x16x1xf32>
    tpu.vector_store %arg6[%c0_25, %c0_26, %c0_27, %c0_28], %18 {strides = array<i32>} : memref<2x4x16x1xf32, #tpu.memory_space<vmem>>, vector<2x4x16x1xf32>,
    %cst_29 = arith.constant dense<0.000000e+00> : vector<2x4x16xf32>
    %20 = vector.multi_reduction <add>, %0, %cst_29 [3] : vector<2x4x16x16xf32> to vector<2x4x16xf32>
    %21 = vector.shape_cast %20 : vector<2x4x16xf32> to vector<2x4x16x1xf32>
    %cst_30 = arith.constant 1.600000e+01 : f32
    %22 = vector.broadcast %cst_30 : f32 to vector<2x4x16x1xf32>
    %23 = arith.divf %21, %22 : vector<2x4x16x1xf32>
    %c0_31 = arith.constant 0 : index
    %c0_32 = arith.constant 0 : index
    %c0_33 = arith.constant 0 : index
    %c0_34 = arith.constant 0 : index
    %24 = vector.load %arg7[%c0_31, %c0_32, %c0_33, %c0_34] : memref<2x4x16x1xf32, #tpu.memory_space<vmem>>, vector<2x4x16x1xf32>
    tpu.vector_store %arg7[%c0_31, %c0_32, %c0_33, %c0_34], %23 {strides = array<i32>} : memref<2x4x16x1xf32, #tpu.memory_space<vmem>>, vector<2x4x16x1xf32>,
    return
  }
  func.func @transform_0(%arg0: i32) -> (i32, i32, i32, i32) {
    %c0_i32 = arith.constant 0 : i32
    %c0_i32_0 = arith.constant 0 : i32
    %c0_i32_1 = arith.constant 0 : i32
    %c0_i32_2 = arith.constant 0 : i32
    return %arg0, %c0_i32, %c0_i32_0, %c0_i32_1 : i32, i32, i32, i32
  }
  func.func @transform_1(%arg0: i32) -> (i32, i32, i32, i32) {
    %c0_i32 = arith.constant 0 : i32
    %c0_i32_0 = arith.constant 0 : i32
    %c0_i32_1 = arith.constant 0 : i32
    %c0_i32_2 = arith.constant 0 : i32
    return %arg0, %c0_i32, %c0_i32_0, %c0_i32_1 : i32, i32, i32, i32
  }
  func.func @transform_2(%arg0: i32) -> (i32, i32, i32, i32) {
    %c0_i32 = arith.constant 0 : i32
    %c0_i32_0 = arith.constant 0 : i32
    %c0_i32_1 = arith.constant 0 : i32
    %c0_i32_2 = arith.constant 0 : i32
    return %arg0, %c0_i32, %c0_i32_0, %c0_i32_1 : i32, i32, i32, i32
  }
  func.func @transform_3(%arg0: i32) -> (i32, i32, i32, i32) {
    %c0_i32 = arith.constant 0 : i32
    %c0_i32_0 = arith.constant 0 : i32
    %c0_i32_1 = arith.constant 0 : i32
    %c0_i32_2 = arith.constant 0 : i32
    return %arg0, %c0_i32, %c0_i32_0, %c0_i32_1 : i32, i32, i32, i32
  }
  func.func @transform_4(%arg0: i32) -> (i32, i32, i32, i32) {
    %c0_i32 = arith.constant 0 : i32
    %c0_i32_0 = arith.constant 0 : i32
    %c0_i32_1 = arith.constant 0 : i32
    %c0_i32_2 = arith.constant 0 : i32
    return %arg0, %c0_i32, %c0_i32_0, %c0_i32_1 : i32, i32, i32, i32
  }
  func.func @transform_5(%arg0: i32) -> (i32, i32, i32, i32) {
    %c0_i32 = arith.constant 0 : i32
    %c0_i32_0 = arith.constant 0 : i32
    %c0_i32_1 = arith.constant 0 : i32
    %c0_i32_2 = arith.constant 0 : i32
    return %arg0, %c0_i32, %c0_i32_0, %c0_i32_1 : i32, i32, i32, i32
  }
  func.func @transform_6(%arg0: i32) -> (i32, i32, i32, i32) {
    %c0_i32 = arith.constant 0 : i32
    %c0_i32_0 = arith.constant 0 : i32
    %c0_i32_1 = arith.constant 0 : i32
    %c0_i32_2 = arith.constant 0 : i32
    return %arg0, %c0_i32, %c0_i32_0, %c0_i32_1 : i32, i32, i32, i32
  }
}

module attributes {stable_mosaic.version = 11 : i64} {
  func.func @_apply_gates_kernel(%arg0: i32, %arg1: memref<2x4x16x16xf32, #tpu.memory_space<vmem>>, %arg2: memref<2x4x1x16xf32, #tpu.memory_space<vmem>>, %arg3: memref<2x4x16x1xf32, #tpu.memory_space<vmem>>, %arg4: memref<2x1x16x16xf32, #tpu.memory_space<vmem>>, %arg5: memref<2x4x16x16xf32, #tpu.memory_space<vmem>>) attributes {dimension_semantics = [#tpu.dimension_semantics<parallel>], iteration_bounds = array<i64: 1>, scalar_prefetch = 0 : i64, scratch_operands = 0 : i64, tpu.core_type = #tpu.core_type<tc>, window_params = [{transform_indices = @transform_0, window_bounds = array<i64: 2, 4, 16, 16>}, {transform_indices = @transform_1, window_bounds = array<i64: 2, 4, 1, 16>}, {transform_indices = @transform_2, window_bounds = array<i64: 2, 4, 16, 1>}, {transform_indices = @transform_3, window_bounds = array<i64: 2, 1, 16, 16>}, {transform_indices = @transform_4, window_bounds = array<i64: 2, 4, 16, 16>}]} {
    %c0 = arith.constant 0 : index
    %c0_0 = arith.constant 0 : index
    %c0_1 = arith.constant 0 : index
    %c0_2 = arith.constant 0 : index
    %0 = vector.load %arg1[%c0, %c0_0, %c0_1, %c0_2] : memref<2x4x16x16xf32, #tpu.memory_space<vmem>>, vector<2x4x16x16xf32>
    %c0_3 = arith.constant 0 : index
    %c0_4 = arith.constant 0 : index
    %c0_5 = arith.constant 0 : index
    %c0_6 = arith.constant 0 : index
    %1 = vector.load %arg2[%c0_3, %c0_4, %c0_5, %c0_6] : memref<2x4x1x16xf32, #tpu.memory_space<vmem>>, vector<2x4x1x16xf32>
    %c0_7 = arith.constant 0 : index
    %c0_8 = arith.constant 0 : index
    %c0_9 = arith.constant 0 : index
    %c0_10 = arith.constant 0 : index
    %2 = vector.load %arg3[%c0_7, %c0_8, %c0_9, %c0_10] : memref<2x4x16x1xf32, #tpu.memory_space<vmem>>, vector<2x4x16x1xf32>
    %3 = vector.broadcast %1 : vector<2x4x1x16xf32> to vector<2x4x16x16xf32>
    %4 = vector.broadcast %2 : vector<2x4x16x1xf32> to vector<2x4x16x16xf32>
    %5 = arith.addf %3, %4 : vector<2x4x16x16xf32>
    %c0_11 = arith.constant 0 : index
    %c0_12 = arith.constant 0 : index
    %c0_13 = arith.constant 0 : index
    %c0_14 = arith.constant 0 : index
    %6 = vector.load %arg4[%c0_11, %c0_12, %c0_13, %c0_14] : memref<2x1x16x16xf32, #tpu.memory_space<vmem>>, vector<2x1x16x16xf32>
    %7 = vector.broadcast %6 : vector<2x1x16x16xf32> to vector<2x4x16x16xf32>
    %8 = arith.addf %5, %7 : vector<2x4x16x16xf32>
    %cst = arith.constant 0.333333343 : f32
    %9 = vector.broadcast %cst : f32 to vector<2x4x16x16xf32>
    %10 = arith.mulf %8, %9 : vector<2x4x16x16xf32>
    %11 = arith.mulf %0, %10 : vector<2x4x16x16xf32>
    %c0_15 = arith.constant 0 : index
    %c0_16 = arith.constant 0 : index
    %c0_17 = arith.constant 0 : index
    %c0_18 = arith.constant 0 : index
    %12 = vector.load %arg5[%c0_15, %c0_16, %c0_17, %c0_18] : memref<2x4x16x16xf32, #tpu.memory_space<vmem>>, vector<2x4x16x16xf32>
    tpu.vector_store %arg5[%c0_15, %c0_16, %c0_17, %c0_18], %11 {strides = array<i32>} : memref<2x4x16x16xf32, #tpu.memory_space<vmem>>, vector<2x4x16x16xf32>,
    return
  }
  func.func @transform_0(%arg0: i32) -> (i32, i32, i32, i32) {
    %c0_i32 = arith.constant 0 : i32
    %c0_i32_0 = arith.constant 0 : i32
    %c0_i32_1 = arith.constant 0 : i32
    %c0_i32_2 = arith.constant 0 : i32
    return %arg0, %c0_i32, %c0_i32_0, %c0_i32_1 : i32, i32, i32, i32
  }
  func.func @transform_1(%arg0: i32) -> (i32, i32, i32, i32) {
    %c0_i32 = arith.constant 0 : i32
    %c0_i32_0 = arith.constant 0 : i32
    %c0_i32_1 = arith.constant 0 : i32
    %c0_i32_2 = arith.constant 0 : i32
    return %arg0, %c0_i32, %c0_i32_0, %c0_i32_1 : i32, i32, i32, i32
  }
  func.func @transform_2(%arg0: i32) -> (i32, i32, i32, i32) {
    %c0_i32 = arith.constant 0 : i32
    %c0_i32_0 = arith.constant 0 : i32
    %c0_i32_1 = arith.constant 0 : i32
    %c0_i32_2 = arith.constant 0 : i32
    return %arg0, %c0_i32, %c0_i32_0, %c0_i32_1 : i32, i32, i32, i32
  }
  func.func @transform_3(%arg0: i32) -> (i32, i32, i32, i32) {
    %c0_i32 = arith.constant 0 : i32
    %c0_i32_0 = arith.constant 0 : i32
    %c0_i32_1 = arith.constant 0 : i32
    %c0_i32_2 = arith.constant 0 : i32
    return %arg0, %c0_i32, %c0_i32_0, %c0_i32_1 : i32, i32, i32, i32
  }
  func.func @transform_4(%arg0: i32) -> (i32, i32, i32, i32) {
    %c0_i32 = arith.constant 0 : i32
    %c0_i32_0 = arith.constant 0 : i32
    %c0_i32_1 = arith.constant 0 : i32
    %c0_i32_2 = arith.constant 0 : i32
    return %arg0, %c0_i32, %c0_i32_0, %c0_i32_1 : i32, i32, i32, i32
  }
}

</mosaic_0001>

<llo_original>
// kernel: triplet_attention.2
$region0: #{triplet_attention.2}
  #allocation0 [shape = 'u32[]', space=smem, size = 0x4, offset = 0x4, fixed_abs, tag = 'smem constant byte address 0x4 - core index']
  #allocation1 [shape = 'u32[144,128]{1,0:T(1,128)}', space=vmem, size = 0x12000, scoped, tag = 'internal scratch']
  %s0 = inlined_call_operand.hbm [shape: f32[2,4,16,16], index: 0, kind: input, shape index: {}]
  %s1 = inlined_call_operand.vmem [shape: f32[2,1,16,16], index: 1, kind: output, shape index: {0}]
  %s2 = inlined_call_operand.vmem [shape: f32[2,1,16,16], index: 2, kind: output, shape index: {1}]
  %s3 = inlined_call_operand.vmem [shape: f32[2,4,1,16], index: 3, kind: output, shape index: {2}]
  %s4 = inlined_call_operand.vmem [shape: f32[2,4,1,16], index: 4, kind: output, shape index: {3}]
  %s5 = inlined_call_operand.vmem [shape: f32[2,4,16,1], index: 5, kind: output, shape index: {4}]
  %s6 = inlined_call_operand.vmem [shape: f32[2,4,16,1], index: 6, kind: output, shape index: {5}]
  %7 = xla_tuple %s1, %s2, %s3, %s4, %s5, %s6
  %s8 = sld [smem:[#allocation0]]
  $region58: #{triplet_attention.2} parent=0
    _
  %s10 = ssub.s32 1, %s8
  %s11 = scalar_select 0, %s10, %s8
  $region1: #{triplet_attention.2} parent=0
    #allocation2 [shape = 'u8[65536]{0}', space=vmem, size = 0x10000, scoped, tag = 'input window, operand 0, single buffered']
    #allocation3 [shape = 's32[1]{0}', space=sflag, size = 0x4, scoped, tag = 'scoped memory for triplet_attention.2']
    %12 = vsyncpa [#allocation3], 0
    // Predicated region
    $region2: #{triplet_attention.2} parent=1 // pred_check
      _
    $region3: #{triplet_attention.2} parent=1 // pred_check_branch
      %14 = sbr.rel (0) target = $region5
    $region4: #{triplet_attention.2} parent=1 // pred_region
      %s16 = ssub.s32 2048, 2048
      %17 = vsyncadd [#allocation3], %s16
      %s18 = sshll.u32 [#allocation2], 4
      %s19 = int_to_ptr.vmem [resolvable:$true] %s18
      %24 = dma.hbm_to_vmem [thread:$0]  %s0, 2048, %s19, [#allocation3], 128, 128, 8
    $region5: #{triplet_attention.2} parent=1 // pred_fallthru
      _
    // Predicated region
    $region6: #{triplet_attention.2} parent=1 // pred_check
      _
    $region7: #{triplet_attention.2} parent=1 // pred_check_branch
      %26 = sbr.rel (0) target = $region9
    $region8: #{triplet_attention.2} parent=1 // pred_region
      %27 = dma.done [#allocation3], 2048
    $region9: #{triplet_attention.2} parent=1 // pred_fallthru
      _
    %v28 = vld [vmem:[#allocation2] sm:$0xff]
    %v29 = vld [vmem:[#allocation2 + $0x8] sm:$0xff]
    %v30 = vld [vmem:[#allocation2 + $0x10] sm:$0xff]
    %v31 = vld [vmem:[#allocation2 + $0x18] sm:$0xff]
    %v32 = vld [vmem:[#allocation2 + $0x20] sm:$0xff]
    %v33 = vld [vmem:[#allocation2 + $0x28] sm:$0xff]
    %v34 = vld [vmem:[#allocation2 + $0x30] sm:$0xff]
    %v35 = vld [vmem:[#allocation2 + $0x38] sm:$0xff]
    %v36 = vld [vmem:[#allocation2 + $0x40] sm:$0xff]
    %v37 = vld [vmem:[#allocation2 + $0x48] sm:$0xff]
    %v38 = vld [vmem:[#allocation2 + $0x50] sm:$0xff]
    %v39 = vld [vmem:[#allocation2 + $0x58] sm:$0xff]
    %v40 = vld [vmem:[#allocation2 + $0x60] sm:$0xff]
    %v41 = vld [vmem:[#allocation2 + $0x68] sm:$0xff]
    %v42 = vld [vmem:[#allocation2 + $0x70] sm:$0xff]
    %v43 = vld [vmem:[#allocation2 + $0x78] sm:$0xff]
    %vm44 = vcmask 130048
    %v45 = vsel %vm44, %v28, -inf
    %v46 = vsel %vm44, %v30, -inf
    %v47 = vmax.f32 %v45, %v46
    %v48 = vsel %vm44, %v32, -inf
    %v49 = vmax.f32 %v47, %v48
    %v50 = vsel %vm44, %v34, -inf
    %v51 = vmax.f32 %v49, %v50
    %v52 = vsel %vm44, %v29, -inf
    %v53 = vsel %vm44, %v31, -inf
    %v54 = vmax.f32 %v52, %v53
    %v55 = vsel %vm44, %v33, -inf
    %v56 = vmax.f32 %v54, %v55
    %v57 = vsel %vm44, %v35, -inf
    %v58 = vmax.f32 %v56, %v57
    %v59 = vsel %vm44, %v36, -inf
    %v60 = vsel %vm44, %v38, -inf
    %v61 = vmax.f32 %v59, %v60
    %v62 = vsel %vm44, %v40, -inf
    %v63 = vmax.f32 %v61, %v62
    %v64 = vsel %vm44, %v42, -inf
    %v65 = vmax.f32 %v63, %v64
    %v66 = vsel %vm44, %v37, -inf
    %v67 = vsel %vm44, %v39, -inf
    %v68 = vmax.f32 %v66, %v67
    %v69 = vsel %vm44, %v41, -inf
    %v70 = vmax.f32 %v68, %v69
    %v71 = vsel %vm44, %v43, -inf
    %v72 = vmax.f32 %v70, %v71
    %73 = vst.msk [vmem:[%s1] sm:$0xff] %vm44, %v51
    %74 = vst.msk [vmem:[%s1 + $0x8] sm:$0xff] %vm44, %v58
    %75 = vst.msk [vmem:[%s1 + $0x10] sm:$0xff] %vm44, %v65
    %76 = vst.msk [vmem:[%s1 + $0x18] sm:$0xff] %vm44, %v72
    %v77 = vsel %vm44, %v28, 0.0
    %v78 = vsel %vm44, %v30, 0.0
    %v79 = vadd.f32 %v77, %v78
    %v80 = vsel %vm44, %v32, 0.0
    %v81 = vadd.f32 %v79, %v80
    %v82 = vsel %vm44, %v34, 0.0
    %v83 = vadd.f32 %v81, %v82
    %v84 = vsel %vm44, %v29, 0.0
    %v85 = vsel %vm44, %v31, 0.0
    %v86 = vadd.f32 %v84, %v85
    %v87 = vsel %vm44, %v33, 0.0
    %v88 = vadd.f32 %v86, %v87
    %v89 = vsel %vm44, %v35, 0.0
    %v90 = vadd.f32 %v88, %v89
    %v91 = vsel %vm44, %v36, 0.0
    %v92 = vsel %vm44, %v38, 0.0
    %v93 = vadd.f32 %v91, %v92
    %v94 = vsel %vm44, %v40, 0.0
    %v95 = vadd.f32 %v93, %v94
    %v96 = vsel %vm44, %v42, 0.0
    %v97 = vadd.f32 %v95, %v96
    %v98 = vsel %vm44, %v37, 0.0
    %v99 = vsel %vm44, %v39, 0.0
    %v100 = vadd.f32 %v98, %v99
    %v101 = vsel %vm44, %v41, 0.0
    %v102 = vadd.f32 %v100, %v101
    %v103 = vsel %vm44, %v43, 0.0
    %v104 = vadd.f32 %v102, %v103
    %v105 = vrcp.pop 4.0
    %v106 = vmul.f32 %v83, %v105
    %v107 = vmul.f32 %v90, %v105
    %v108 = vmul.f32 %v97, %v105
    %v109 = vmul.f32 %v104, %v105
    %110 = vst.msk [vmem:[%s2] sm:$0xff] %vm44, %v106
    %111 = vst.msk [vmem:[%s2 + $0x8] sm:$0xff] %vm44, %v107
    %112 = vst.msk [vmem:[%s2 + $0x10] sm:$0xff] %vm44, %v108
    %113 = vst.msk [vmem:[%s2 + $0x18] sm:$0xff] %vm44, %v109
    %v114 = vmax.f32 %v45, %v52
    %v115 = vrot.slane %v114, 4
    %v116 = vmax.f32 %v114, %v115
    %v117 = vrot.slane %v116, 2
    %v118 = vmax.f32 %v116, %v117
    %v119 = vrot.slane %v118, 1
    %v120 = vmax.f32 %v118, %v119
    %v121 = vmax.f32 %v46, %v53
    %v122 = vrot.slane %v121, 4
    %v123 = vmax.f32 %v121, %v122
    %v124 = vrot.slane %v123, 2
    %v125 = vmax.f32 %v123, %v124
    %v126 = vrot.slane %v125, 1
    %v127 = vmax.f32 %v125, %v126
    %v128 = vmax.f32 %v48, %v55
    %v129 = vrot.slane %v128, 4
    %v130 = vmax.f32 %v128, %v129
    %v131 = vrot.slane %v130, 2
    %v132 = vmax.f32 %v130, %v131
    %v133 = vrot.slane %v132, 1
    %v134 = vmax.f32 %v132, %v133
    %v135 = vmax.f32 %v50, %v57
    %v136 = vrot.slane %v135, 4
    %v137 = vmax.f32 %v135, %v136
    %v138 = vrot.slane %v137, 2
    %v139 = vmax.f32 %v137, %v138
    %v140 = vrot.slane %v139, 1
    %v141 = vmax.f32 %v139, %v140
    %v142 = vmax.f32 %v59, %v66
    %v143 = vrot.slane %v142, 4
    %v144 = vmax.f32 %v142, %v143
    %v145 = vrot.slane %v144, 2
    %v146 = vmax.f32 %v144, %v145
    %v147 = vrot.slane %v146, 1
    %v148 = vmax.f32 %v146, %v147
    %v149 = vmax.f32 %v60, %v67
    %v150 = vrot.slane %v149, 4
    %v151 = vmax.f32 %v149, %v150
    %v152 = vrot.slane %v151, 2
    %v153 = vmax.f32 %v151, %v152
    %v154 = vrot.slane %v153, 1
    %v155 = vmax.f32 %v153, %v154
    %v156 = vmax.f32 %v62, %v69
    %v157 = vrot.slane %v156, 4
    %v158 = vmax.f32 %v156, %v157
    %v159 = vrot.slane %v158, 2
    %v160 = vmax.f32 %v158, %v159
    %v161 = vrot.slane %v160, 1
    %v162 = vmax.f32 %v160, %v161
    %v163 = vmax.f32 %v64, %v71
    %v164 = vrot.slane %v163, 4
    %v165 = vmax.f32 %v163, %v164
    %v166 = vrot.slane %v165, 2
    %v167 = vmax.f32 %v165, %v166
    %v168 = vrot.slane %v167, 1
    %v169 = vmax.f32 %v167, %v168
    %vm170 = vcmask 122880
    %171 = vst.msk [vmem:[%s3] sm:$0x1] %vm170, %v120
    %172 = vst.msk [vmem:[%s3 + $0x1] sm:$0x1] %vm170, %v127
    %173 = vst.msk [vmem:[%s3 + $0x2] sm:$0x1] %vm170, %v134
    %174 = vst.msk [vmem:[%s3 + $0x3] sm:$0x1] %vm170, %v141
    %175 = vst.msk [vmem:[%s3 + $0x4] sm:$0x1] %vm170, %v148
    %176 = vst.msk [vmem:[%s3 + $0x5] sm:$0x1] %vm170, %v155
    %177 = vst.msk [vmem:[%s3 + $0x6] sm:$0x1] %vm170, %v162
    %178 = vst.msk [vmem:[%s3 + $0x7] sm:$0x1] %vm170, %v169
    %v179 = vadd.f32 %v77, %v84
    %v180 = vrot.slane %v179, 4
    %v181 = vadd.f32 %v179, %v180
    %v182 = vrot.slane %v181, 2
    %v183 = vadd.f32 %v181, %v182
    %v184 = vrot.slane %v183, 1
    %v185 = vadd.f32 %v183, %v184
    %v186 = vadd.f32 %v78, %v85
    %v187 = vrot.slane %v186, 4
    %v188 = vadd.f32 %v186, %v187
    %v189 = vrot.slane %v188, 2
    %v190 = vadd.f32 %v188, %v189
    %v191 = vrot.slane %v190, 1
    %v192 = vadd.f32 %v190, %v191
    %v193 = vadd.f32 %v80, %v87
    %v194 = vrot.slane %v193, 4
    %v195 = vadd.f32 %v193, %v194
    %v196 = vrot.slane %v195, 2
    %v197 = vadd.f32 %v195, %v196
    %v198 = vrot.slane %v197, 1
    %v199 = vadd.f32 %v197, %v198
    %v200 = vadd.f32 %v82, %v89
    %v201 = vrot.slane %v200, 4
    %v202 = vadd.f32 %v200, %v201
    %v203 = vrot.slane %v202, 2
    %v204 = vadd.f32 %v202, %v203
    %v205 = vrot.slane %v204, 1
    %v206 = vadd.f32 %v204, %v205
    %v207 = vadd.f32 %v91, %v98
    %v208 = vrot.slane %v207, 4
    %v209 = vadd.f32 %v207, %v208
    %v210 = vrot.slane %v209, 2
    %v211 = vadd.f32 %v209, %v210
    %v212 = vrot.slane %v211, 1
    %v213 = vadd.f32 %v211, %v212
    %v214 = vadd.f32 %v92, %v99
    %v215 = vrot.slane %v214, 4
    %v216 = vadd.f32 %v214, %v215
    %v217 = vrot.slane %v216, 2
    %v218 = vadd.f32 %v216, %v217
    %v219 = vrot.slane %v218, 1
    %v220 = vadd.f32 %v218, %v219
    %v221 = vadd.f32 %v94, %v101
    %v222 = vrot.slane %v221, 4
    %v223 = vadd.f32 %v221, %v222
    %v224 = vrot.slane %v223, 2
    %v225 = vadd.f32 %v223, %v224
    %v226 = vrot.slane %v225, 1
    %v227 = vadd.f32 %v225, %v226
    %v228 = vadd.f32 %v96, %v103
    %v229 = vrot.slane %v228, 4
    %v230 = vadd.f32 %v228, %v229
    %v231 = vrot.slane %v230, 2
    %v232 = vadd.f32 %v230, %v231
    %v233 = vrot.slane %v232, 1
    %v234 = vadd.f32 %v232, %v233
    %v235 = vrcp.pop 16.0
    %v236 = vmul.f32 %v185, %v235
    %v237 = vmul.f32 %v192, %v235
    %v238 = vmul.f32 %v199, %v235
    %v239 = vmul.f32 %v206, %v235
    %v240 = vmul.f32 %v213, %v235
    %v241 = vmul.f32 %v220, %v235
    %v242 = vmul.f32 %v227, %v235
    %v243 = vmul.f32 %v234, %v235
    %244 = vst.msk [vmem:[%s4] sm:$0x1] %vm170, %v236
    %245 = vst.msk [vmem:[%s4 + $0x1] sm:$0x1] %vm170, %v237
    %246 = vst.msk [vmem:[%s4 + $0x2] sm:$0x1] %vm170, %v238
    %247 = vst.msk [vmem:[%s4 + $0x3] sm:$0x1] %vm170, %v239
    %248 = vst.msk [vmem:[%s4 + $0x4] sm:$0x1] %vm170, %v240
    %249 = vst.msk [vmem:[%s4 + $0x5] sm:$0x1] %vm170, %v241
    %250 = vst.msk [vmem:[%s4 + $0x6] sm:$0x1] %vm170, %v242
    %251 = vst.msk [vmem:[%s4 + $0x7] sm:$0x1] %vm170, %v243
    %252 = vmax.xlane.f32.xlu0 %v45
    %v253 = vpop.xlane.xlu0 %252
    %254 = vmax.xlane.f32.xlu0 %v52
    %v255 = vpop.xlane.xlu0 %254
    %256 = vmax.xlane.f32.xlu0 %v46
    %v257 = vpop.xlane.xlu0 %256
    %258 = vmax.xlane.f32.xlu0 %v53
    %v259 = vpop.xlane.xlu0 %258
    %260 = vmax.xlane.f32.xlu0 %v48
    %v261 = vpop.xlane.xlu0 %260
    %262 = vmax.xlane.f32.xlu0 %v55
    %v263 = vpop.xlane.xlu0 %262
    %264 = vmax.xlane.f32.xlu0 %v50
    %v265 = vpop.xlane.xlu0 %264
    %266 = vmax.xlane.f32.xlu0 %v57
    %v267 = vpop.xlane.xlu0 %266
    %268 = vmax.xlane.f32.xlu0 %v59
    %v269 = vpop.xlane.xlu0 %268
    %270 = vmax.xlane.f32.xlu0 %v66
    %v271 = vpop.xlane.xlu0 %270
    %272 = vmax.xlane.f32.xlu0 %v60
    %v273 = vpop.xlane.xlu0 %272
    %274 = vmax.xlane.f32.xlu0 %v67
    %v275 = vpop.xlane.xlu0 %274
    %276 = vmax.xlane.f32.xlu0 %v62
    %v277 = vpop.xlane.xlu0 %276
    %278 = vmax.xlane.f32.xlu0 %v69
    %v279 = vpop.xlane.xlu0 %278
    %280 = vmax.xlane.f32.xlu0 %v64
    %v281 = vpop.xlane.xlu0 %280
    %282 = vmax.xlane.f32.xlu0 %v71
    %v283 = vpop.xlane.xlu0 %282
    %vm284 = vcmask 7168
    %285 = vst.msk [vmem:[%s5] sm:$0xff] %vm284, %v253
    %286 = vst.msk [vmem:[%s5 + $0x8] sm:$0xff] %vm284, %v255
    %287 = vst.msk [vmem:[%s5 + $0x10] sm:$0xff] %vm284, %v257
    %288 = vst.msk [vmem:[%s5 + $0x18] sm:$0xff] %vm284, %v259
    %289 = vst.msk [vmem:[%s5 + $0x20] sm:$0xff] %vm284, %v261
    %290 = vst.msk [vmem:[%s5 + $0x28] sm:$0xff] %vm284, %v263
    %291 = vst.msk [vmem:[%s5 + $0x30] sm:$0xff] %vm284, %v265
    %292 = vst.msk [vmem:[%s5 + $0x38] sm:$0xff] %vm284, %v267
    %293 = vst.msk [vmem:[%s5 + $0x40] sm:$0xff] %vm284, %v269
    %294 = vst.msk [vmem:[%s5 + $0x48] sm:$0xff] %vm284, %v271
    %295 = vst.msk [vmem:[%s5 + $0x50] sm:$0xff] %vm284, %v273
    %296 = vst.msk [vmem:[%s5 + $0x58] sm:$0xff] %vm284, %v275
    %297 = vst.msk [vmem:[%s5 + $0x60] sm:$0xff] %vm284, %v277
    %298 = vst.msk [vmem:[%s5 + $0x68] sm:$0xff] %vm284, %v279
    %299 = vst.msk [vmem:[%s5 + $0x70] sm:$0xff] %vm284, %v281
    %300 = vst.msk [vmem:[%s5 + $0x78] sm:$0xff] %vm284, %v283
    %301 = vadd.xlane.f32.xlu0 %v77
    %v302 = vpop.xlane.xlu0 %301
    %303 = vadd.xlane.f32.xlu0 %v84
    %v304 = vpop.xlane.xlu0 %303
    %305 = vadd.xlane.f32.xlu0 %v78
    %v306 = vpop.xlane.xlu0 %305
    %307 = vadd.xlane.f32.xlu0 %v85
    %v308 = vpop.xlane.xlu0 %307
    %309 = vadd.xlane.f32.xlu0 %v80
    %v310 = vpop.xlane.xlu0 %309
    %311 = vadd.xlane.f32.xlu0 %v87
    %v312 = vpop.xlane.xlu0 %311
    %313 = vadd.xlane.f32.xlu0 %v82
    %v314 = vpop.xlane.xlu0 %313
    %315 = vadd.xlane.f32.xlu0 %v89
    %v316 = vpop.xlane.xlu0 %315
    %317 = vadd.xlane.f32.xlu0 %v91
    %v318 = vpop.xlane.xlu0 %317
    %319 = vadd.xlane.f32.xlu0 %v98
    %v320 = vpop.xlane.xlu0 %319
    %321 = vadd.xlane.f32.xlu0 %v92
    %v322 = vpop.xlane.xlu0 %321
    %323 = vadd.xlane.f32.xlu0 %v99
    %v324 = vpop.xlane.xlu0 %323
    %325 = vadd.xlane.f32.xlu0 %v94
    %v326 = vpop.xlane.xlu0 %325
    %327 = vadd.xlane.f32.xlu0 %v101
    %v328 = vpop.xlane.xlu0 %327
    %329 = vadd.xlane.f32.xlu0 %v96
    %v330 = vpop.xlane.xlu0 %329
    %331 = vadd.xlane.f32.xlu0 %v103
    %v332 = vpop.xlane.xlu0 %331
    %v333 = vmul.f32 %v302, %v235
    %v334 = vmul.f32 %v304, %v235
    %v335 = vmul.f32 %v306, %v235
    %v336 = vmul.f32 %v308, %v235
    %v337 = vmul.f32 %v310, %v235
    %v338 = vmul.f32 %v312, %v235
    %v339 = vmul.f32 %v314, %v235
    %v340 = vmul.f32 %v316, %v235
    %v341 = vmul.f32 %v318, %v235
    %v342 = vmul.f32 %v320, %v235
    %v343 = vmul.f32 %v322, %v235
    %v344 = vmul.f32 %v324, %v235
    %v345 = vmul.f32 %v326, %v235
    %v346 = vmul.f32 %v328, %v235
    %v347 = vmul.f32 %v330, %v235
    %v348 = vmul.f32 %v332, %v235
    %349 = vst.msk [vmem:[%s6] sm:$0xff] %vm284, %v333
    %350 = vst.msk [vmem:[%s6 + $0x8] sm:$0xff] %vm284, %v334
    %351 = vst.msk [vmem:[%s6 + $0x10] sm:$0xff] %vm284, %v335
    %352 = vst.msk [vmem:[%s6 + $0x18] sm:$0xff] %vm284, %v336
    %353 = vst.msk [vmem:[%s6 + $0x20] sm:$0xff] %vm284, %v337
    %354 = vst.msk [vmem:[%s6 + $0x28] sm:$0xff] %vm284, %v338
    %355 = vst.msk [vmem:[%s6 + $0x30] sm:$0xff] %vm284, %v339
    %356 = vst.msk [vmem:[%s6 + $0x38] sm:$0xff] %vm284, %v340
    %357 = vst.msk [vmem:[%s6 + $0x40] sm:$0xff] %vm284, %v341
    %358 = vst.msk [vmem:[%s6 + $0x48] sm:$0xff] %vm284, %v342
    %359 = vst.msk [vmem:[%s6 + $0x50] sm:$0xff] %vm284, %v343
    %360 = vst.msk [vmem:[%s6 + $0x58] sm:$0xff] %vm284, %v344
    %361 = vst.msk [vmem:[%s6 + $0x60] sm:$0xff] %vm284, %v345
    %362 = vst.msk [vmem:[%s6 + $0x68] sm:$0xff] %vm284, %v346
    %363 = vst.msk [vmem:[%s6 + $0x70] sm:$0xff] %vm284, %v347
    %364 = vst.msk [vmem:[%s6 + $0x78] sm:$0xff] %vm284, %v348
    // Predicated region
    $region10: #{triplet_attention.2} parent=1 // pred_check
      _
    $region11: #{triplet_attention.2} parent=1 // pred_check_branch
      %366 = sbr.rel (0) target = $region13
    $region12: #{triplet_attention.2} parent=1 // pred_region
      _
    $region13: #{triplet_attention.2} parent=1 // pred_fallthru
      _
    // Predicated region
    $region14: #{triplet_attention.2} parent=1 // pred_check
      _
    $region15: #{triplet_attention.2} parent=1 // pred_check_branch
      %368 = sbr.rel (0) target = $region17
    $region16: #{triplet_attention.2} parent=1 // pred_region
      _
    $region17: #{triplet_attention.2} parent=1 // pred_fallthru
      _
    // Predicated region
    $region18: #{triplet_attention.2} parent=1 // pred_check
      _
    $region19: #{triplet_attention.2} parent=1 // pred_check_branch
      %370 = sbr.rel (0) target = $region21
    $region20: #{triplet_attention.2} parent=1 // pred_region
      _
    $region21: #{triplet_attention.2} parent=1 // pred_fallthru
      _
    // Predicated region
    $region22: #{triplet_attention.2} parent=1 // pred_check
      _
    $region23: #{triplet_attention.2} parent=1 // pred_check_branch
      %372 = sbr.rel (0) target = $region25
    $region24: #{triplet_attention.2} parent=1 // pred_region
      _
    $region25: #{triplet_attention.2} parent=1 // pred_fallthru
      _
    // Predicated region
    $region26: #{triplet_attention.2} parent=1 // pred_check
      _
    $region27: #{triplet_attention.2} parent=1 // pred_check_branch
      %374 = sbr.rel (0) target = $region29
    $region28: #{triplet_attention.2} parent=1 // pred_region
      _
    $region29: #{triplet_attention.2} parent=1 // pred_fallthru
      _
    // Predicated region
    $region30: #{triplet_attention.2} parent=1 // pred_check
      _
    $region31: #{triplet_attention.2} parent=1 // pred_check_branch
      %376 = sbr.rel (0) target = $region33
    $region32: #{triplet_attention.2} parent=1 // pred_region
      _
    $region33: #{triplet_attention.2} parent=1 // pred_fallthru
      _
    // Predicated region
    $region34: #{triplet_attention.2} parent=1 // pred_check
      _
    $region35: #{triplet_attention.2} parent=1 // pred_check_branch
      %378 = sbr.rel (0) target = $region37
    $region36: #{triplet_attention.2} parent=1 // pred_region
      _
    $region37: #{triplet_attention.2} parent=1 // pred_fallthru
      _
    // Predicated region
    $region38: #{triplet_attention.2} parent=1 // pred_check
      _
    $region39: #{triplet_attention.2} parent=1 // pred_check_branch
      %380 = sbr.rel (0) target = $region41
    $region40: #{triplet_attention.2} parent=1 // pred_region
      _
    $region41: #{triplet_attention.2} parent=1 // pred_fallthru
      _
    // Predicated region
    $region42: #{triplet_attention.2} parent=1 // pred_check
      _
    $region43: #{triplet_attention.2} parent=1 // pred_check_branch
      %382 = sbr.rel (0) target = $region45
    $region44: #{triplet_attention.2} parent=1 // pred_region
      _
    $region45: #{triplet_attention.2} parent=1 // pred_fallthru
      _
    // Predicated region
    $region46: #{triplet_attention.2} parent=1 // pred_check
      _
    $region47: #{triplet_attention.2} parent=1 // pred_check_branch
      %384 = sbr.rel (0) target = $region49
    $region48: #{triplet_attention.2} parent=1 // pred_region
      _
    $region49: #{triplet_attention.2} parent=1 // pred_fallthru
      _
    // Predicated region
    $region50: #{triplet_attention.2} parent=1 // pred_check
      _
    $region51: #{triplet_attention.2} parent=1 // pred_check_branch
      %386 = sbr.rel (0) target = $region53
    $region52: #{triplet_attention.2} parent=1 // pred_region
      _
    $region53: #{triplet_attention.2} parent=1 // pred_fallthru
      _
    // Predicated region
    $region54: #{triplet_attention.2} parent=1 // pred_check
      _
    $region55: #{triplet_attention.2} parent=1 // pred_check_branch
      %388 = sbr.rel (0) target = $region57
    $region56: #{triplet_attention.2} parent=1 // pred_region
      _
    $region57: #{triplet_attention.2} parent=1 // pred_fallthru
      _
    %389 = vsyncpa [#allocation3], 1

// kernel: triplet_attention.3
$region0: #{triplet_attention.3}
  #allocation0 [shape = 'u32[]', space=smem, size = 0x4, offset = 0x4, fixed_abs, tag = 'smem constant byte address 0x4 - core index']
  #allocation1 [shape = 'u32[144,128]{1,0:T(1,128)}', space=vmem, size = 0x12000, scoped, tag = 'internal scratch']
  %s0 = inlined_call_operand.vmem [shape: f32[2,4,16,16], index: 0, kind: input, shape index: {}]
  %s1 = inlined_call_operand.vmem [shape: f32[2,4,1,16], index: 1, kind: input, shape index: {}]
  %s2 = inlined_call_operand.vmem [shape: f32[2,4,16,1], index: 2, kind: input, shape index: {}]
  %s3 = inlined_call_operand.vmem [shape: f32[2,1,16,16], index: 3, kind: input, shape index: {}]
  %s4 = inlined_call_operand.hbm [shape: f32[2,4,16,16], index: 4, kind: output, shape index: {}]
  %s5 = sld [smem:[#allocation0]]
  $region26: #{triplet_attention.3} parent=0
    _
  %s7 = ssub.s32 1, %s5
  %s8 = scalar_select 0, %s7, %s5
  $region1: #{triplet_attention.3} parent=0
    #allocation2 [shape = 'u8[65536]{0}', space=vmem, size = 0x10000, scoped, tag = 'output window, operand 0, single buffered']
    #allocation3 [shape = 's32[1]{0}', space=sflag, size = 0x4, scoped, tag = 'scoped memory for triplet_attention.3']
    %9 = vsyncpa [#allocation3], 0
    // Predicated region
    $region2: #{triplet_attention.3} parent=1 // pred_check
      _
    $region3: #{triplet_attention.3} parent=1 // pred_check_branch
      %11 = sbr.rel (0) target = $region5
    $region4: #{triplet_attention.3} parent=1 // pred_region
      _
    $region5: #{triplet_attention.3} parent=1 // pred_fallthru
      _
    // Predicated region
    $region6: #{triplet_attention.3} parent=1 // pred_check
      _
    $region7: #{triplet_attention.3} parent=1 // pred_check_branch
      %13 = sbr.rel (0) target = $region9
    $region8: #{triplet_attention.3} parent=1 // pred_region
      _
    $region9: #{triplet_attention.3} parent=1 // pred_fallthru
      _
    // Predicated region
    $region10: #{triplet_attention.3} parent=1 // pred_check
      _
    $region11: #{triplet_attention.3} parent=1 // pred_check_branch
      %15 = sbr.rel (0) target = $region13
    $region12: #{triplet_attention.3} parent=1 // pred_region
      _
    $region13: #{triplet_attention.3} parent=1 // pred_fallthru
      _
    // Predicated region
    $region14: #{triplet_attention.3} parent=1 // pred_check
      _
    $region15: #{triplet_attention.3} parent=1 // pred_check_branch
      %17 = sbr.rel (0) target = $region17
    $region16: #{triplet_attention.3} parent=1 // pred_region
      _
    $region17: #{triplet_attention.3} parent=1 // pred_fallthru
      _
    %v18 = vld [vmem:[%s0] sm:$0xff]
    %v19 = vld [vmem:[%s0 + $0x8] sm:$0xff]
    %v20 = vld [vmem:[%s0 + $0x10] sm:$0xff]
    %v21 = vld [vmem:[%s0 + $0x18] sm:$0xff]
    %v22 = vld [vmem:[%s0 + $0x20] sm:$0xff]
    %v23 = vld [vmem:[%s0 + $0x28] sm:$0xff]
    %v24 = vld [vmem:[%s0 + $0x30] sm:$0xff]
    %v25 = vld [vmem:[%s0 + $0x38] sm:$0xff]
    %v26 = vld [vmem:[%s0 + $0x40] sm:$0xff]
    %v27 = vld [vmem:[%s0 + $0x48] sm:$0xff]
    %v28 = vld [vmem:[%s0 + $0x50] sm:$0xff]
    %v29 = vld [vmem:[%s0 + $0x58] sm:$0xff]
    %v30 = vld [vmem:[%s0 + $0x60] sm:$0xff]
    %v31 = vld [vmem:[%s0 + $0x68] sm:$0xff]
    %v32 = vld [vmem:[%s0 + $0x70] sm:$0xff]
    %v33 = vld [vmem:[%s0 + $0x78] sm:$0xff]
    %v34 = vld [vmem:[%s1] sm:$0x1]
    %v35 = vld [vmem:[%s1 + $0x1] sm:$0x1]
    %v36 = vld [vmem:[%s1 + $0x2] sm:$0x1]
    %v37 = vld [vmem:[%s1 + $0x3] sm:$0x1]
    %v38 = vld [vmem:[%s1 + $0x4] sm:$0x1]
    %v39 = vld [vmem:[%s1 + $0x5] sm:$0x1]
    %v40 = vld [vmem:[%s1 + $0x6] sm:$0x1]
    %v41 = vld [vmem:[%s1 + $0x7] sm:$0x1]
    %v42 = vld [vmem:[%s2] sm:$0xff]
    %v43 = vld [vmem:[%s2 + $0x8] sm:$0xff]
    %v44 = vld [vmem:[%s2 + $0x10] sm:$0xff]
    %v45 = vld [vmem:[%s2 + $0x18] sm:$0xff]
    %v46 = vld [vmem:[%s2 + $0x20] sm:$0xff]
    %v47 = vld [vmem:[%s2 + $0x28] sm:$0xff]
    %v48 = vld [vmem:[%s2 + $0x30] sm:$0xff]
    %v49 = vld [vmem:[%s2 + $0x38] sm:$0xff]
    %v50 = vld [vmem:[%s2 + $0x40] sm:$0xff]
    %v51 = vld [vmem:[%s2 + $0x48] sm:$0xff]
    %v52 = vld [vmem:[%s2 + $0x50] sm:$0xff]
    %v53 = vld [vmem:[%s2 + $0x58] sm:$0xff]
    %v54 = vld [vmem:[%s2 + $0x60] sm:$0xff]
    %v55 = vld [vmem:[%s2 + $0x68] sm:$0xff]
    %v56 = vld [vmem:[%s2 + $0x70] sm:$0xff]
    %v57 = vld [vmem:[%s2 + $0x78] sm:$0xff]
    %v66 = vlaneseq
    %v67 = vshrl.u32 %v66, 7
    %v68 = vsub.s32 0, %v67
    %v69 = vrot.slane %v34, %v68
    %v70 = vlaneseq
    %v71 = vshrl.u32 %v70, 7
    %v72 = vsub.s32 0, %v71
    %v73 = vrot.slane %v35, %v72
    %v74 = vlaneseq
    %v75 = vshrl.u32 %v74, 7
    %v76 = vsub.s32 0, %v75
    %v77 = vrot.slane %v36, %v76
    %v78 = vlaneseq
    %v79 = vshrl.u32 %v78, 7
    %v80 = vsub.s32 0, %v79
    %v81 = vrot.slane %v37, %v80
    %v82 = vlaneseq
    %v83 = vshrl.u32 %v82, 7
    %v84 = vsub.s32 0, %v83
    %v85 = vrot.slane %v38, %v84
    %v86 = vlaneseq
    %v87 = vshrl.u32 %v86, 7
    %v88 = vsub.s32 0, %v87
    %v89 = vrot.slane %v39, %v88
    %v90 = vlaneseq
    %v91 = vshrl.u32 %v90, 7
    %v92 = vsub.s32 0, %v91
    %v93 = vrot.slane %v40, %v92
    %v94 = vlaneseq
    %v95 = vshrl.u32 %v94, 7
    %v96 = vsub.s32 0, %v95
    %v97 = vrot.slane %v41, %v96
    %107 = vset.pattern.permute.xlu0 0
    %108 = vperm.xlu0 %107, %v42
    %v109 = vpop.permute.xlu0 %108
    %112 = vset.pattern.permute.xlu0 0
    %113 = vperm.xlu0 %112, %v43
    %v114 = vpop.permute.xlu0 %113
    %117 = vset.pattern.permute.xlu0 0
    %118 = vperm.xlu0 %117, %v44
    %v119 = vpop.permute.xlu0 %118
    %122 = vset.pattern.permute.xlu0 0
    %123 = vperm.xlu0 %122, %v45
    %v124 = vpop.permute.xlu0 %123
    %127 = vset.pattern.permute.xlu0 0
    %128 = vperm.xlu0 %127, %v46
    %v129 = vpop.permute.xlu0 %128
    %132 = vset.pattern.permute.xlu0 0
    %133 = vperm.xlu0 %132, %v47
    %v134 = vpop.permute.xlu0 %133
    %137 = vset.pattern.permute.xlu0 0
    %138 = vperm.xlu0 %137, %v48
    %v139 = vpop.permute.xlu0 %138
    %142 = vset.pattern.permute.xlu0 0
    %143 = vperm.xlu0 %142, %v49
    %v144 = vpop.permute.xlu0 %143
    %147 = vset.pattern.permute.xlu0 0
    %148 = vperm.xlu0 %147, %v50
    %v149 = vpop.permute.xlu0 %148
    %152 = vset.pattern.permute.xlu0 0
    %153 = vperm.xlu0 %152, %v51
    %v154 = vpop.permute.xlu0 %153
    %157 = vset.pattern.permute.xlu0 0
    %158 = vperm.xlu0 %157, %v52
    %v159 = vpop.permute.xlu0 %158
    %162 = vset.pattern.permute.xlu0 0
    %163 = vperm.xlu0 %162, %v53
    %v164 = vpop.permute.xlu0 %163
    %167 = vset.pattern.permute.xlu0 0
    %168 = vperm.xlu0 %167, %v54
    %v169 = vpop.permute.xlu0 %168
    %172 = vset.pattern.permute.xlu0 0
    %173 = vperm.xlu0 %172, %v55
    %v174 = vpop.permute.xlu0 %173
    %177 = vset.pattern.permute.xlu0 0
    %178 = vperm.xlu0 %177, %v56
    %v179 = vpop.permute.xlu0 %178
    %182 = vset.pattern.permute.xlu0 0
    %183 = vperm.xlu0 %182, %v57
    %v184 = vpop.permute.xlu0 %183
    %v186 = vadd.f32 %v69, %v109
    %v187 = vadd.f32 %v69, %v114
    %v188 = vadd.f32 %v73, %v119
    %v189 = vadd.f32 %v73, %v124
    %v190 = vadd.f32 %v77, %v129
    %v191 = vadd.f32 %v77, %v134
    %v192 = vadd.f32 %v81, %v139
    %v193 = vadd.f32 %v81, %v144
    %v194 = vadd.f32 %v85, %v149
    %v195 = vadd.f32 %v85, %v154
    %v196 = vadd.f32 %v89, %v159
    %v197 = vadd.f32 %v89, %v164
    %v198 = vadd.f32 %v93, %v169
    %v199 = vadd.f32 %v93, %v174
    %v200 = vadd.f32 %v97, %v179
    %v201 = vadd.f32 %v97, %v184
    %v202 = vld [vmem:[%s3] sm:$0xff]
    %v203 = vld [vmem:[%s3 + $0x8] sm:$0xff]
    %v204 = vld [vmem:[%s3 + $0x10] sm:$0xff]
    %v205 = vld [vmem:[%s3 + $0x18] sm:$0xff]
    %v206 = vadd.f32 %v186, %v202
    %v207 = vadd.f32 %v187, %v203
    %v208 = vadd.f32 %v188, %v202
    %v209 = vadd.f32 %v189, %v203
    %v210 = vadd.f32 %v190, %v202
    %v211 = vadd.f32 %v191, %v203
    %v212 = vadd.f32 %v192, %v202
    %v213 = vadd.f32 %v193, %v203
    %v214 = vadd.f32 %v194, %v204
    %v215 = vadd.f32 %v195, %v205
    %v216 = vadd.f32 %v196, %v204
    %v217 = vadd.f32 %v197, %v205
    %v218 = vadd.f32 %v198, %v204
    %v219 = vadd.f32 %v199, %v205
    %v220 = vadd.f32 %v200, %v204
    %v221 = vadd.f32 %v201, %v205
    %v222 = vmul.f32 %v206, 0.33333334
    %v223 = vmul.f32 %v207, 0.33333334
    %v224 = vmul.f32 %v208, 0.33333334
    %v225 = vmul.f32 %v209, 0.33333334
    %v226 = vmul.f32 %v210, 0.33333334
    %v227 = vmul.f32 %v211, 0.33333334
    %v228 = vmul.f32 %v212, 0.33333334
    %v229 = vmul.f32 %v213, 0.33333334
    %v230 = vmul.f32 %v214, 0.33333334
    %v231 = vmul.f32 %v215, 0.33333334
    %v232 = vmul.f32 %v216, 0.33333334
    %v233 = vmul.f32 %v217, 0.33333334
    %v234 = vmul.f32 %v218, 0.33333334
    %v235 = vmul.f32 %v219, 0.33333334
    %v236 = vmul.f32 %v220, 0.33333334
    %v237 = vmul.f32 %v221, 0.33333334
    %v238 = vmul.f32 %v18, %v222
    %v239 = vmul.f32 %v19, %v223
    %v240 = vmul.f32 %v20, %v224
    %v241 = vmul.f32 %v21, %v225
    %v242 = vmul.f32 %v22, %v226
    %v243 = vmul.f32 %v23, %v227
    %v244 = vmul.f32 %v24, %v228
    %v245 = vmul.f32 %v25, %v229
    %v246 = vmul.f32 %v26, %v230
    %v247 = vmul.f32 %v27, %v231
    %v248 = vmul.f32 %v28, %v232
    %v249 = vmul.f32 %v29, %v233
    %v250 = vmul.f32 %v30, %v234
    %v251 = vmul.f32 %v31, %v235
    %v252 = vmul.f32 %v32, %v236
    %v253 = vmul.f32 %v33, %v237
    %vm254 = vcmask 130048
    %255 = vst.msk [vmem:[#allocation2] sm:$0xff] %vm254, %v238
    %256 = vst.msk [vmem:[#allocation2 + $0x8] sm:$0xff] %vm254, %v239
    %257 = vst.msk [vmem:[#allocation2 + $0x10] sm:$0xff] %vm254, %v240
    %258 = vst.msk [vmem:[#allocation2 + $0x18] sm:$0xff] %vm254, %v241
    %259 = vst.msk [vmem:[#allocation2 + $0x20] sm:$0xff] %vm254, %v242
    %260 = vst.msk [vmem:[#allocation2 + $0x28] sm:$0xff] %vm254, %v243
    %261 = vst.msk [vmem:[#allocation2 + $0x30] sm:$0xff] %vm254, %v244
    %262 = vst.msk [vmem:[#allocation2 + $0x38] sm:$0xff] %vm254, %v245
    %263 = vst.msk [vmem:[#allocation2 + $0x40] sm:$0xff] %vm254, %v246
    %264 = vst.msk [vmem:[#allocation2 + $0x48] sm:$0xff] %vm254, %v247
    %265 = vst.msk [vmem:[#allocation2 + $0x50] sm:$0xff] %vm254, %v248
    %266 = vst.msk [vmem:[#allocation2 + $0x58] sm:$0xff] %vm254, %v249
    %267 = vst.msk [vmem:[#allocation2 + $0x60] sm:$0xff] %vm254, %v250
    %268 = vst.msk [vmem:[#allocation2 + $0x68] sm:$0xff] %vm254, %v251
    %269 = vst.msk [vmem:[#allocation2 + $0x70] sm:$0xff] %vm254, %v252
    %270 = vst.msk [vmem:[#allocation2 + $0x78] sm:$0xff] %vm254, %v253
    // Predicated region
    $region18: #{triplet_attention.3} parent=1 // pred_check
      _
    $region19: #{triplet_attention.3} parent=1 // pred_check_branch
      %272 = sbr.rel (0) target = $region21
    $region20: #{triplet_attention.3} parent=1 // pred_region
      %s274 = ssub.s32 2048, 2048
      %275 = vsyncadd [#allocation3], %s274
      %s276 = sshll.u32 [#allocation2], 4
      %s277 = int_to_ptr.vmem [resolvable:$true] %s276
      %282 = dma.vmem_to_hbm [thread:$0]  %s277, 2048, %s4, [#allocation3], 128, 128, 8
    $region21: #{triplet_attention.3} parent=1 // pred_fallthru
      _
    // Predicated region
    $region22: #{triplet_attention.3} parent=1 // pred_check
      _
    $region23: #{triplet_attention.3} parent=1 // pred_check_branch
      %284 = sbr.rel (0) target = $region25
    $region24: #{triplet_attention.3} parent=1 // pred_region
      %285 = dma.done [#allocation3], 2048
    $region25: #{triplet_attention.3} parent=1 // pred_fallthru
      _
    %286 = vsyncpa [#allocation3], 1

</llo_original>
